<compile_context>
chip_gen: v7x
topology: tpu7x:2x2x1
jax: 0.10.0
libtpu: 0.0.40
codegen_flags: <defaults>
</compile_context>

<pallas_src>
import functools

import jax
import jax.numpy as jnp
import numpy as np
from jax.experimental import pallas as pl
from jax.experimental.pallas import tpu as pltpu


def _round_up(x, m):
    return (x + m - 1) // m * m


def _choose_batch_tile(B, block_b):
    """Pick a sublane-aligned batch tile.

    - Start from block_b (default 256: fills the 256-wide MXU M dim on v6e/v7x).
    - Keep >=2 grid steps when two full 128-row tiles exist (v7x megacore sharding).
    - Shrink while zero-padding would waste >~25% of computed rows.
    """
    TB = min(block_b, _round_up(B, 8))
    if TB >= 256 and _round_up(B, TB) // TB < 2:
        TB //= 2
    while TB > 8 and 4 * (_round_up(B, TB) - B) > _round_up(B, TB):
        TB //= 2
    return max(8, (TB // 8) * 8)


# ----------------------------------------------------------------------------
# Fused kernel: one grid step = one batch tile, full weights resident in VMEM.
# ----------------------------------------------------------------------------
def _mlp_kernel(x_ref, w1_ref, ss_ref, w2_ref, b2_ref, o_ref):
    # x_ref:  (TB, D)  bf16
    # w1_ref: (D, H)   bf16
    # ss_ref: (2, H)   f32   row 0 = scale = gamma/sqrt(var+eps)
    #                        row 1 = shift = beta + (b1 - mean)*scale
    # w2_ref: (H, P)   bf16
    # b2_ref: (1, P)   f32
    # o_ref:  (TB, P)  f32
    h = jnp.dot(x_ref[...], w1_ref[...], preferred_element_type=jnp.float32)   # MXU bf16
    h = jnp.maximum(h * ss_ref[0:1, :] + ss_ref[1:2, :], jnp.float32(0.0))     # VPU f32
    y = jnp.dot(h.astype(jnp.bfloat16), w2_ref[...],
                preferred_element_type=jnp.float32) + b2_ref[...]              # MXU bf16
    o_ref[...] = y.astype(o_ref.dtype)


def mlp_pallas(x, params, *, block_b=256):
    """Fused MLP forward. x: (B, D) f32 -> (B, P) f32."""
    B, D = x.shape
    H = params["w1"].shape[1]
    P = params["w2"].shape[1]

    TB = _choose_batch_tile(B, block_b)
    Bp = _round_up(B, TB)
    if Bp != B:
        x = jnp.pad(x, ((0, Bp - B), (0, 0)))
    x = x.astype(jnp.bfloat16)

    cost = pl.CostEstimate(
        flops=2 * Bp * (D * H + H * P),
        transcendentals=0,
        bytes_accessed=(2 * Bp * D + 2 * D * H + 2 * H * P   # bf16 x, W1, W2
                        + 4 * (2 * H + P)                    # f32 scale/shift, b2
                        + 4 * Bp * P),                       # f32 output
    )

    out = pl.pallas_call(
        _mlp_kernel,
        out_shape=jax.ShapeDtypeStruct((Bp, P), jnp.float32),
        grid=(Bp // TB,),
        in_specs=[
            pl.BlockSpec((TB, D), lambda i: (i, 0)),
            pl.BlockSpec((D, H), lambda i: (0, 0)),   # constant block -> DMA'd once
            pl.BlockSpec((2, H), lambda i: (0, 0)),
            pl.BlockSpec((H, P), lambda i: (0, 0)),
            pl.BlockSpec((1, P), lambda i: (0, 0)),
        ],
        out_specs=pl.BlockSpec((TB, P), lambda i: (i, 0)),
        compiler_params=pltpu.CompilerParams(
            dimension_semantics=("parallel",)),
        cost_estimate=cost,
    )(x, params["w1"], params["scale_shift"], params["w2"], params["b2"])
    return out[:B]


# ----------------------------------------------------------------------------
# Parameter construction (deterministic) + BN/bias folding
# ----------------------------------------------------------------------------
def init_mlp_params(key, dim, hidden_size, projection_size, eps=1e-5):
    ks = jax.random.split(key, 8)
    w1 = jax.random.normal(ks[0], (dim, hidden_size), jnp.float32) / np.sqrt(dim)
    b1 = jax.random.normal(ks[1], (hidden_size,), jnp.float32) * 0.1
    gamma = jax.random.uniform(ks[2], (hidden_size,), jnp.float32, 0.5, 1.5)
    beta = jax.random.normal(ks[3], (hidden_size,), jnp.float32) * 0.1
    running_mean = jax.random.normal(ks[4], (hidden_size,), jnp.float32) * 0.1
    running_var = jax.random.uniform(ks[5], (hidden_size,), jnp.float32, 0.5, 1.5)
    w2 = jax.random.normal(ks[6], (hidden_size, projection_size), jnp.float32) / np.sqrt(hidden_size)
    b2 = jax.random.normal(ks[7], (projection_size,), jnp.float32) * 0.1

    raw = dict(w1=w1, b1=b1, gamma=gamma, beta=beta, mean=running_mean,
               var=running_var, w2=w2, b2=b2, eps=jnp.float32(eps))

    # Fold inference BN + first-layer bias into per-feature scale/shift:
    #   (x@W1 + b1 - mean)*scale*gamma + beta == (x@W1)*scale + shift
    scale = gamma / jnp.sqrt(running_var + eps)
    shift = beta + (b1 - running_mean) * scale
    fused = dict(
        w1=w1.astype(jnp.bfloat16),
        scale_shift=jnp.stack([scale, shift], axis=0).astype(jnp.float32),  # (2, H)
        w2=w2.astype(jnp.bfloat16),
        b2=b2.reshape(1, projection_size).astype(jnp.float32),
    )
    return raw, fused


# ----------------------------------------------------------------------------
# Pure-JAX reference (mirrors the PyTorch op sequence, unfused, f32)
# ----------------------------------------------------------------------------
def mlp_reference(x, raw):
    h = x @ raw["w1"] + raw["b1"]
    h = (h - raw["mean"]) / jnp.sqrt(raw["var"] + raw["eps"]) * raw["gamma"] + raw["beta"]
    h = jnp.maximum(h, 0.0)
    return h @ raw["w2"] + raw["b2"]


if __name__ == "__main__":
    # Small shapes consistent with MLP(dim, projection_size=128, hidden_size=...)
    B, D, H, P = 16, 256, 512, 128

    key = jax.random.PRNGKey(0)
    k_x, k_p = jax.random.split(key)
    x = jax.random.normal(k_x, (B, D), jnp.float32)

    raw_params, fused_params = init_mlp_params(k_p, D, H, P)

    fwd = jax.jit(functools.partial(mlp_pallas))
    out = jax.block_until_ready(fwd(x, fused_params))
    assert out.shape == (B, P), out.shape

    ref = jax.block_until_ready(mlp_reference(x, raw_params))
    # bf16 matmul operands (f32 accumulation) -> loosened tolerance vs f32 reference.
    np.testing.assert_allclose(np.asarray(out), np.asarray(ref), rtol=2e-2, atol=2e-2)

    print("KERNEL_OK")
</pallas_src>

<mosaic_0001>
module attributes {stable_mosaic.version = 11 : i64} {
  func.func @_mlp_kernel(%arg0: i32, %arg1: memref<16x256xbf16, #tpu.memory_space<vmem>>, %arg2: memref<256x512xbf16, #tpu.memory_space<vmem>>, %arg3: memref<2x512xf32, #tpu.memory_space<vmem>>, %arg4: memref<512x128xbf16, #tpu.memory_space<vmem>>, %arg5: memref<1x128xf32, #tpu.memory_space<vmem>>, %arg6: memref<16x128xf32, #tpu.memory_space<vmem>>) attributes {dimension_semantics = [#tpu.dimension_semantics<parallel>], iteration_bounds = array<i64: 1>, scalar_prefetch = 0 : i64, scratch_operands = 0 : i64, tpu.core_type = #tpu.core_type<tc>, window_params = [{transform_indices = @transform_0, window_bounds = array<i64: 16, 256>}, {pipeline_mode = #tpu.pipeline_mode<synchronous>, transform_indices = @transform_1, window_bounds = array<i64: 256, 512>}, {pipeline_mode = #tpu.pipeline_mode<synchronous>, transform_indices = @transform_2, window_bounds = array<i64: 2, 512>}, {pipeline_mode = #tpu.pipeline_mode<synchronous>, transform_indices = @transform_3, window_bounds = array<i64: 512, 128>}, {pipeline_mode = #tpu.pipeline_mode<synchronous>, transform_indices = @transform_4, window_bounds = array<i64: 1, 128>}, {transform_indices = @transform_5, window_bounds = array<i64: 16, 128>}]} {
    %c0 = arith.constant 0 : index
    %c0_0 = arith.constant 0 : index
    %0 = vector.load %arg1[%c0, %c0_0] : memref<16x256xbf16, #tpu.memory_space<vmem>>, vector<16x256xbf16>
    %c0_1 = arith.constant 0 : index
    %c0_2 = arith.constant 0 : index
    %1 = vector.load %arg2[%c0_1, %c0_2] : memref<256x512xbf16, #tpu.memory_space<vmem>>, vector<256x512xbf16>
    %cst = arith.constant dense<0.000000e+00> : vector<16x512xf32>
    %2 = tpu.matmul %0, %1, %cst {dimension_numbers = #tpu.dot_dimension_numbers<[1], [0], [0], [1], [0, 0, 1, 1], [], []>} : vector<16x256xbf16>, vector<256x512xbf16>, vector<16x512xf32> -> vector<16x512xf32>
    %c0_3 = arith.constant 0 : index
    %c0_4 = arith.constant 0 : index
    %3 = vector.load %arg3[%c0_3, %c0_4] : memref<2x512xf32, #tpu.memory_space<vmem>>, vector<1x512xf32>
    %4 = vector.broadcast %3 : vector<1x512xf32> to vector<16x512xf32>
    %5 = arith.mulf %2, %4 : vector<16x512xf32>
    %c1 = arith.constant 1 : index
    %c0_5 = arith.constant 0 : index
    %6 = vector.load %arg3[%c1, %c0_5] : memref<2x512xf32, #tpu.memory_space<vmem>>, vector<1x512xf32>
    %7 = vector.broadcast %6 : vector<1x512xf32> to vector<16x512xf32>
    %8 = arith.addf %5, %7 : vector<16x512xf32>
    %cst_6 = arith.constant 0.000000e+00 : f32
    %9 = vector.broadcast %cst_6 : f32 to vector<16x512xf32>
    %10 = arith.maximumf %8, %9 : vector<16x512xf32>
    %11 = arith.truncf %10 : vector<16x512xf32> to vector<16x512xbf16>
    %c0_7 = arith.constant 0 : index
    %c0_8 = arith.constant 0 : index
    %12 = vector.load %arg4[%c0_7, %c0_8] : memref<512x128xbf16, #tpu.memory_space<vmem>>, vector<512x128xbf16>
    %cst_9 = arith.constant dense<0.000000e+00> : vector<16x128xf32>
    %13 = tpu.matmul %11, %12, %cst_9 {dimension_numbers = #tpu.dot_dimension_numbers<[1], [0], [0], [1], [0, 0, 1, 1], [], []>} : vector<16x512xbf16>, vector<512x128xbf16>, vector<16x128xf32> -> vector<16x128xf32>
    %c0_10 = arith.constant 0 : index
    %c0_11 = arith.constant 0 : index
    %14 = vector.load %arg5[%c0_10, %c0_11] : memref<1x128xf32, #tpu.memory_space<vmem>>, vector<1x128xf32>
    %15 = vector.broadcast %14 : vector<1x128xf32> to vector<16x128xf32>
    %16 = arith.addf %13, %15 : vector<16x128xf32>
    %c0_12 = arith.constant 0 : index
    %c0_13 = arith.constant 0 : index
    %17 = vector.load %arg6[%c0_12, %c0_13] : memref<16x128xf32, #tpu.memory_space<vmem>>, vector<16x128xf32>
    tpu.vector_store %arg6[%c0_12, %c0_13], %16 {strides = array<i32>} : memref<16x128xf32, #tpu.memory_space<vmem>>, vector<16x128xf32>,
    return
  }
  func.func @transform_0(%arg0: i32) -> (i32, i32) {
    %c0_i32 = arith.constant 0 : i32
    %c0_i32_0 = arith.constant 0 : i32
    return %arg0, %c0_i32 : i32, i32
  }
  func.func @transform_1(%arg0: i32) -> (i32, i32) {
    %c0_i32 = arith.constant 0 : i32
    %c0_i32_0 = arith.constant 0 : i32
    %c0_i32_1 = arith.constant 0 : i32
    return %c0_i32, %c0_i32_0 : i32, i32
  }
  func.func @transform_2(%arg0: i32) -> (i32, i32) {
    %c0_i32 = arith.constant 0 : i32
    %c0_i32_0 = arith.constant 0 : i32
    %c0_i32_1 = arith.constant 0 : i32
    return %c0_i32, %c0_i32_0 : i32, i32
  }
  func.func @transform_3(%arg0: i32) -> (i32, i32) {
    %c0_i32 = arith.constant 0 : i32
    %c0_i32_0 = arith.constant 0 : i32
    %c0_i32_1 = arith.constant 0 : i32
    return %c0_i32, %c0_i32_0 : i32, i32
  }
  func.func @transform_4(%arg0: i32) -> (i32, i32) {
    %c0_i32 = arith.constant 0 : i32
    %c0_i32_0 = arith.constant 0 : i32
    %c0_i32_1 = arith.constant 0 : i32
    return %c0_i32, %c0_i32_0 : i32, i32
  }
  func.func @transform_5(%arg0: i32) -> (i32, i32) {
    %c0_i32 = arith.constant 0 : i32
    %c0_i32_0 = arith.constant 0 : i32
    return %arg0, %c0_i32 : i32, i32
  }
}

</mosaic_0001>

<llo_original>
// kernel: mlp_pallas.1
$region0: #{mlp_pallas.1}
  #allocation0 [shape = 'u32[]', space=smem, size = 0x4, offset = 0x4, fixed_abs, tag = 'smem constant byte address 0x4 - core index']
  #allocation1 [shape = 'u32[144,128]{1,0:T(1,128)}', space=vmem, size = 0x12000, scoped, tag = 'internal scratch']
  %s0 = inlined_call_operand.vmem [shape: bf16[16,256], index: 0, kind: input, shape index: {}]
  %s1 = inlined_call_operand.hbm [shape: bf16[256,512], index: 1, kind: input, shape index: {}]
  %s2 = inlined_call_operand.vmem [shape: f32[2,512], index: 2, kind: input, shape index: {}]
  %s3 = inlined_call_operand.hbm [shape: bf16[512,128], index: 3, kind: input, shape index: {}]
  %s4 = inlined_call_operand.vmem [shape: f32[1,128], index: 4, kind: input, shape index: {}]
  %s5 = inlined_call_operand.hbm [shape: f32[16,128], index: 5, kind: output, shape index: {}]
  %s6 = sld [smem:[#allocation0]]
  $region38: #{mlp_pallas.1} parent=0
    _
  %s8 = ssub.s32 1, %s6
  %s9 = scalar_select 0, %s8, %s6
  $region1: #{mlp_pallas.1} parent=0
    #allocation2 [shape = 'u8[262144]{0}', space=vmem, size = 0x40000, scoped, tag = 'input window, operand 1, single buffered']
    #allocation3 [shape = 's32[1]{0}', space=sflag, size = 0x4, scoped, tag = 'scoped memory for mlp_pallas.1']
    #allocation4 [shape = 's32[1]{0}', space=sflag, size = 0x4, scoped, tag = 'scoped memory for mlp_pallas.1']
    #allocation5 [shape = 'u8[131072]{0}', space=vmem, size = 0x20000, scoped, tag = 'input window, operand 3, single buffered']
    #allocation6 [shape = 's32[1]{0}', space=sflag, size = 0x4, scoped, tag = 'scoped memory for mlp_pallas.1']
    #allocation7 [shape = 'u8[8192]{0}', space=vmem, size = 0x2000, scoped, tag = 'output window, operand 0, single buffered']
    %10 = vsyncpa [#allocation3], 0
    %11 = vsyncpa [#allocation6], 0
    %12 = vsyncpa [#allocation4], 0
    // Predicated region
    $region2: #{mlp_pallas.1} parent=1 // pred_check
      _
    $region3: #{mlp_pallas.1} parent=1 // pred_check_branch
      %14 = sbr.rel (0) target = $region5
    $region4: #{mlp_pallas.1} parent=1 // pred_region
      _
    $region5: #{mlp_pallas.1} parent=1 // pred_fallthru
      _
    // Predicated region
    $region6: #{mlp_pallas.1} parent=1 // pred_check
      _
    $region7: #{mlp_pallas.1} parent=1 // pred_check_branch
      %16 = sbr.rel (0) target = $region9
    $region8: #{mlp_pallas.1} parent=1 // pred_region
      %s18 = ssub.s32 8192, 8192
      %19 = vsyncadd [#allocation3], %s18
      %s20 = sshll.u32 [#allocation2], 4
      %s21 = int_to_ptr.vmem [resolvable:$true] %s20
      %26 = dma.hbm_to_vmem [thread:$0]  %s1, 8192, %s21, [#allocation3], 256, 256, 16
    $region9: #{mlp_pallas.1} parent=1 // pred_fallthru
      _
    // Predicated region
    $region10: #{mlp_pallas.1} parent=1 // pred_check
      _
    $region11: #{mlp_pallas.1} parent=1 // pred_check_branch
      %28 = sbr.rel (0) target = $region13
    $region12: #{mlp_pallas.1} parent=1 // pred_region
      _
    $region13: #{mlp_pallas.1} parent=1 // pred_fallthru
      _
    // Predicated region
    $region14: #{mlp_pallas.1} parent=1 // pred_check
      _
    $region15: #{mlp_pallas.1} parent=1 // pred_check_branch
      %30 = sbr.rel (0) target = $region17
    $region16: #{mlp_pallas.1} parent=1 // pred_region
      %s32 = ssub.s32 4096, 4096
      %33 = vsyncadd [#allocation6], %s32
      %s34 = sshll.u32 [#allocation5], 4
      %s35 = int_to_ptr.vmem [resolvable:$true] %s34
      %40 = dma.hbm_to_vmem [thread:$0]  %s3, 4096, %s35, [#allocation6], 64, 64, 4
    $region17: #{mlp_pallas.1} parent=1 // pred_fallthru
      _
    // Predicated region
    $region18: #{mlp_pallas.1} parent=1 // pred_check
      _
    $region19: #{mlp_pallas.1} parent=1 // pred_check_branch
      %42 = sbr.rel (0) target = $region21
    $region20: #{mlp_pallas.1} parent=1 // pred_region
      _
    $region21: #{mlp_pallas.1} parent=1 // pred_fallthru
      _
    // Predicated region
    $region22: #{mlp_pallas.1} parent=1 // pred_check
      _
    $region23: #{mlp_pallas.1} parent=1 // pred_check_branch
      %44 = sbr.rel (0) target = $region25
    $region24: #{mlp_pallas.1} parent=1 // pred_region
      %45 = dma.done [#allocation3], 8192
    $region25: #{mlp_pallas.1} parent=1 // pred_fallthru
      _
    // Predicated region
    $region26: #{mlp_pallas.1} parent=1 // pred_check
      _
    $region27: #{mlp_pallas.1} parent=1 // pred_check_branch
      %47 = sbr.rel (0) target = $region29
    $region28: #{mlp_pallas.1} parent=1 // pred_region
      %48 = dma.done [#allocation6], 4096
    $region29: #{mlp_pallas.1} parent=1 // pred_fallthru
      _
    %v50 = vld [vmem:[%s0] sm:$0xff]
    %v51 = vld [vmem:[%s0 + $0x8] sm:$0xff]
    %v52 = vld [vmem:[#allocation2] sm:$0xff]
    %v53 = vld [vmem:[#allocation2 + $0x8] sm:$0xff]
    %v54 = vld [vmem:[#allocation2 + $0x10] sm:$0xff]
    %v55 = vld [vmem:[#allocation2 + $0x18] sm:$0xff]
    %v56 = vld [vmem:[#allocation2 + $0x20] sm:$0xff]
    %v57 = vld [vmem:[#allocation2 + $0x28] sm:$0xff]
    %v58 = vld [vmem:[#allocation2 + $0x30] sm:$0xff]
    %v59 = vld [vmem:[#allocation2 + $0x38] sm:$0xff]
    %v60 = vld [vmem:[#allocation2 + $0x40] sm:$0xff]
    %v61 = vld [vmem:[#allocation2 + $0x48] sm:$0xff]
    %v62 = vld [vmem:[#allocation2 + $0x50] sm:$0xff]
    %v63 = vld [vmem:[#allocation2 + $0x58] sm:$0xff]
    %v64 = vld [vmem:[#allocation2 + $0x60] sm:$0xff]
    %v65 = vld [vmem:[#allocation2 + $0x68] sm:$0xff]
    %v66 = vld [vmem:[#allocation2 + $0x70] sm:$0xff]
    %v67 = vld [vmem:[#allocation2 + $0x78] sm:$0xff]
    %v68 = vld [vmem:[#allocation2 + $0x80] sm:$0xff]
    %v69 = vld [vmem:[#allocation2 + $0x88] sm:$0xff]
    %v70 = vld [vmem:[#allocation2 + $0x90] sm:$0xff]
    %v71 = vld [vmem:[#allocation2 + $0x98] sm:$0xff]
    %v72 = vld [vmem:[#allocation2 + $0xa0] sm:$0xff]
    %v73 = vld [vmem:[#allocation2 + $0xa8] sm:$0xff]
    %v74 = vld [vmem:[#allocation2 + $0xb0] sm:$0xff]
    %v75 = vld [vmem:[#allocation2 + $0xb8] sm:$0xff]
    %v76 = vld [vmem:[#allocation2 + $0xc0] sm:$0xff]
    %v77 = vld [vmem:[#allocation2 + $0xc8] sm:$0xff]
    %v78 = vld [vmem:[#allocation2 + $0xd0] sm:$0xff]
    %v79 = vld [vmem:[#allocation2 + $0xd8] sm:$0xff]
    %v80 = vld [vmem:[#allocation2 + $0xe0] sm:$0xff]
    %v81 = vld [vmem:[#allocation2 + $0xe8] sm:$0xff]
    %v82 = vld [vmem:[#allocation2 + $0xf0] sm:$0xff]
    %v83 = vld [vmem:[#allocation2 + $0xf8] sm:$0xff]
    %v84 = vld [vmem:[#allocation2 + $0x100] sm:$0xff]
    %v85 = vld [vmem:[#allocation2 + $0x108] sm:$0xff]
    %v86 = vld [vmem:[#allocation2 + $0x110] sm:$0xff]
    %v87 = vld [vmem:[#allocation2 + $0x118] sm:$0xff]
    %v88 = vld [vmem:[#allocation2 + $0x120] sm:$0xff]
    %v89 = vld [vmem:[#allocation2 + $0x128] sm:$0xff]
    %v90 = vld [vmem:[#allocation2 + $0x130] sm:$0xff]
    %v91 = vld [vmem:[#allocation2 + $0x138] sm:$0xff]
    %v92 = vld [vmem:[#allocation2 + $0x140] sm:$0xff]
    %v93 = vld [vmem:[#allocation2 + $0x148] sm:$0xff]
    %v94 = vld [vmem:[#allocation2 + $0x150] sm:$0xff]
    %v95 = vld [vmem:[#allocation2 + $0x158] sm:$0xff]
    %v96 = vld [vmem:[#allocation2 + $0x160] sm:$0xff]
    %v97 = vld [vmem:[#allocation2 + $0x168] sm:$0xff]
    %v98 = vld [vmem:[#allocation2 + $0x170] sm:$0xff]
    %v99 = vld [vmem:[#allocation2 + $0x178] sm:$0xff]
    %v100 = vld [vmem:[#allocation2 + $0x180] sm:$0xff]
    %v101 = vld [vmem:[#allocation2 + $0x188] sm:$0xff]
    %v102 = vld [vmem:[#allocation2 + $0x190] sm:$0xff]
    %v103 = vld [vmem:[#allocation2 + $0x198] sm:$0xff]
    %v104 = vld [vmem:[#allocation2 + $0x1a0] sm:$0xff]
    %v105 = vld [vmem:[#allocation2 + $0x1a8] sm:$0xff]
    %v106 = vld [vmem:[#allocation2 + $0x1b0] sm:$0xff]
    %v107 = vld [vmem:[#allocation2 + $0x1b8] sm:$0xff]
    %v108 = vld [vmem:[#allocation2 + $0x1c0] sm:$0xff]
    %v109 = vld [vmem:[#allocation2 + $0x1c8] sm:$0xff]
    %v110 = vld [vmem:[#allocation2 + $0x1d0] sm:$0xff]
    %v111 = vld [vmem:[#allocation2 + $0x1d8] sm:$0xff]
    %v112 = vld [vmem:[#allocation2 + $0x1e0] sm:$0xff]
    %v113 = vld [vmem:[#allocation2 + $0x1e8] sm:$0xff]
    %v114 = vld [vmem:[#allocation2 + $0x1f0] sm:$0xff]
    %v115 = vld [vmem:[#allocation2 + $0x1f8] sm:$0xff]
    %v118 = vunpack.c.l.b16 %v50
    %v119 = vunpack.c.h.b16 %v50
    %v120 = vunpack.c.l.b16 %v51
    %v121 = vunpack.c.h.b16 %v51
    %v122 = vpack.c.b16 %v120, %v118
    %v123 = vpack.c.b16 %v121, %v119
    %v190 = vunpack.c.l.b16 %v52
    %v191 = vunpack.c.h.b16 %v52
    %v192 = vunpack.c.l.b16 %v53
    %v193 = vunpack.c.h.b16 %v53
    %v194 = vunpack.c.l.b16 %v54
    %v195 = vunpack.c.h.b16 %v54
    %v196 = vunpack.c.l.b16 %v55
    %v197 = vunpack.c.h.b16 %v55
    %v198 = vunpack.c.l.b16 %v56
    %v199 = vunpack.c.h.b16 %v56
    %v200 = vunpack.c.l.b16 %v57
    %v201 = vunpack.c.h.b16 %v57
    %v202 = vunpack.c.l.b16 %v58
    %v203 = vunpack.c.h.b16 %v58
    %v204 = vunpack.c.l.b16 %v59
    %v205 = vunpack.c.h.b16 %v59
    %v206 = vunpack.c.l.b16 %v60
    %v207 = vunpack.c.h.b16 %v60
    %v208 = vunpack.c.l.b16 %v61
    %v209 = vunpack.c.h.b16 %v61
    %v210 = vunpack.c.l.b16 %v62
    %v211 = vunpack.c.h.b16 %v62
    %v212 = vunpack.c.l.b16 %v63
    %v213 = vunpack.c.h.b16 %v63
    %v214 = vunpack.c.l.b16 %v64
    %v215 = vunpack.c.h.b16 %v64
    %v216 = vunpack.c.l.b16 %v65
    %v217 = vunpack.c.h.b16 %v65
    %v218 = vunpack.c.l.b16 %v66
    %v219 = vunpack.c.h.b16 %v66
    %v220 = vunpack.c.l.b16 %v67
    %v221 = vunpack.c.h.b16 %v67
    %v222 = vunpack.c.l.b16 %v68
    %v223 = vunpack.c.h.b16 %v68
    %v224 = vunpack.c.l.b16 %v69
    %v225 = vunpack.c.h.b16 %v69
    %v226 = vunpack.c.l.b16 %v70
    %v227 = vunpack.c.h.b16 %v70
    %v228 = vunpack.c.l.b16 %v71
    %v229 = vunpack.c.h.b16 %v71
    %v230 = vunpack.c.l.b16 %v72
    %v231 = vunpack.c.h.b16 %v72
    %v232 = vunpack.c.l.b16 %v73
    %v233 = vunpack.c.h.b16 %v73
    %v234 = vunpack.c.l.b16 %v74
    %v235 = vunpack.c.h.b16 %v74
    %v236 = vunpack.c.l.b16 %v75
    %v237 = vunpack.c.h.b16 %v75
    %v238 = vunpack.c.l.b16 %v76
    %v239 = vunpack.c.h.b16 %v76
    %v240 = vunpack.c.l.b16 %v77
    %v241 = vunpack.c.h.b16 %v77
    %v242 = vunpack.c.l.b16 %v78
    %v243 = vunpack.c.h.b16 %v78
    %v244 = vunpack.c.l.b16 %v79
    %v245 = vunpack.c.h.b16 %v79
    %v246 = vunpack.c.l.b16 %v80
    %v247 = vunpack.c.h.b16 %v80
    %v248 = vunpack.c.l.b16 %v81
    %v249 = vunpack.c.h.b16 %v81
    %v250 = vunpack.c.l.b16 %v82
    %v251 = vunpack.c.h.b16 %v82
    %v252 = vunpack.c.l.b16 %v83
    %v253 = vunpack.c.h.b16 %v83
    %v254 = vunpack.c.l.b16 %v84
    %v255 = vunpack.c.h.b16 %v84
    %v256 = vunpack.c.l.b16 %v85
    %v257 = vunpack.c.h.b16 %v85
    %v258 = vunpack.c.l.b16 %v86
    %v259 = vunpack.c.h.b16 %v86
    %v260 = vunpack.c.l.b16 %v87
    %v261 = vunpack.c.h.b16 %v87
    %v262 = vunpack.c.l.b16 %v88
    %v263 = vunpack.c.h.b16 %v88
    %v264 = vunpack.c.l.b16 %v89
    %v265 = vunpack.c.h.b16 %v89
    %v266 = vunpack.c.l.b16 %v90
    %v267 = vunpack.c.h.b16 %v90
    %v268 = vunpack.c.l.b16 %v91
    %v269 = vunpack.c.h.b16 %v91
    %v270 = vunpack.c.l.b16 %v92
    %v271 = vunpack.c.h.b16 %v92
    %v272 = vunpack.c.l.b16 %v93
    %v273 = vunpack.c.h.b16 %v93
    %v274 = vunpack.c.l.b16 %v94
    %v275 = vunpack.c.h.b16 %v94
    %v276 = vunpack.c.l.b16 %v95
    %v277 = vunpack.c.h.b16 %v95
    %v278 = vunpack.c.l.b16 %v96
    %v279 = vunpack.c.h.b16 %v96
    %v280 = vunpack.c.l.b16 %v97
    %v281 = vunpack.c.h.b16 %v97
    %v282 = vunpack.c.l.b16 %v98
    %v283 = vunpack.c.h.b16 %v98
    %v284 = vunpack.c.l.b16 %v99
    %v285 = vunpack.c.h.b16 %v99
    %v286 = vunpack.c.l.b16 %v100
    %v287 = vunpack.c.h.b16 %v100
    %v288 = vunpack.c.l.b16 %v101
    %v289 = vunpack.c.h.b16 %v101
    %v290 = vunpack.c.l.b16 %v102
    %v291 = vunpack.c.h.b16 %v102
    %v292 = vunpack.c.l.b16 %v103
    %v293 = vunpack.c.h.b16 %v103
    %v294 = vunpack.c.l.b16 %v104
    %v295 = vunpack.c.h.b16 %v104
    %v296 = vunpack.c.l.b16 %v105
    %v297 = vunpack.c.h.b16 %v105
    %v298 = vunpack.c.l.b16 %v106
    %v299 = vunpack.c.h.b16 %v106
    %v300 = vunpack.c.l.b16 %v107
    %v301 = vunpack.c.h.b16 %v107
    %v302 = vunpack.c.l.b16 %v108
    %v303 = vunpack.c.h.b16 %v108
    %v304 = vunpack.c.l.b16 %v109
    %v305 = vunpack.c.h.b16 %v109
    %v306 = vunpack.c.l.b16 %v110
    %v307 = vunpack.c.h.b16 %v110
    %v308 = vunpack.c.l.b16 %v111
    %v309 = vunpack.c.h.b16 %v111
    %v310 = vunpack.c.l.b16 %v112
    %v311 = vunpack.c.h.b16 %v112
    %v312 = vunpack.c.l.b16 %v113
    %v313 = vunpack.c.h.b16 %v113
    %v314 = vunpack.c.l.b16 %v114
    %v315 = vunpack.c.h.b16 %v114
    %v316 = vunpack.c.l.b16 %v115
    %v317 = vunpack.c.h.b16 %v115
    %v318 = vpack.c.b16 %v194, %v190
    %v319 = vpack.c.b16 %v195, %v191
    %v320 = vpack.c.b16 %v196, %v192
    %v321 = vpack.c.b16 %v197, %v193
    %v322 = vpack.c.b16 %v202, %v198
    %v323 = vpack.c.b16 %v203, %v199
    %v324 = vpack.c.b16 %v204, %v200
    %v325 = vpack.c.b16 %v205, %v201
    %v326 = vpack.c.b16 %v210, %v206
    %v327 = vpack.c.b16 %v211, %v207
    %v328 = vpack.c.b16 %v212, %v208
    %v329 = vpack.c.b16 %v213, %v209
    %v330 = vpack.c.b16 %v218, %v214
    %v331 = vpack.c.b16 %v219, %v215
    %v332 = vpack.c.b16 %v220, %v216
    %v333 = vpack.c.b16 %v221, %v217
    %v334 = vpack.c.b16 %v226, %v222
    %v335 = vpack.c.b16 %v227, %v223
    %v336 = vpack.c.b16 %v228, %v224
    %v337 = vpack.c.b16 %v229, %v225
    %v338 = vpack.c.b16 %v234, %v230
    %v339 = vpack.c.b16 %v235, %v231
    %v340 = vpack.c.b16 %v236, %v232
    %v341 = vpack.c.b16 %v237, %v233
    %v342 = vpack.c.b16 %v242, %v238
    %v343 = vpack.c.b16 %v243, %v239
    %v344 = vpack.c.b16 %v244, %v240
    %v345 = vpack.c.b16 %v245, %v241
    %v346 = vpack.c.b16 %v250, %v246
    %v347 = vpack.c.b16 %v251, %v247
    %v348 = vpack.c.b16 %v252, %v248
    %v349 = vpack.c.b16 %v253, %v249
    %v350 = vpack.c.b16 %v258, %v254
    %v351 = vpack.c.b16 %v259, %v255
    %v352 = vpack.c.b16 %v260, %v256
    %v353 = vpack.c.b16 %v261, %v257
    %v354 = vpack.c.b16 %v266, %v262
    %v355 = vpack.c.b16 %v267, %v263
    %v356 = vpack.c.b16 %v268, %v264
    %v357 = vpack.c.b16 %v269, %v265
    %v358 = vpack.c.b16 %v274, %v270
    %v359 = vpack.c.b16 %v275, %v271
    %v360 = vpack.c.b16 %v276, %v272
    %v361 = vpack.c.b16 %v277, %v273
    %v362 = vpack.c.b16 %v282, %v278
    %v363 = vpack.c.b16 %v283, %v279
    %v364 = vpack.c.b16 %v284, %v280
    %v365 = vpack.c.b16 %v285, %v281
    %v366 = vpack.c.b16 %v290, %v286
    %v367 = vpack.c.b16 %v291, %v287
    %v368 = vpack.c.b16 %v292, %v288
    %v369 = vpack.c.b16 %v293, %v289
    %v370 = vpack.c.b16 %v298, %v294
    %v371 = vpack.c.b16 %v299, %v295
    %v372 = vpack.c.b16 %v300, %v296
    %v373 = vpack.c.b16 %v301, %v297
    %v374 = vpack.c.b16 %v306, %v302
    %v375 = vpack.c.b16 %v307, %v303
    %v376 = vpack.c.b16 %v308, %v304
    %v377 = vpack.c.b16 %v309, %v305
    %v378 = vpack.c.b16 %v314, %v310
    %v379 = vpack.c.b16 %v315, %v311
    %v380 = vpack.c.b16 %v316, %v312
    %v381 = vpack.c.b16 %v317, %v313
    %446 = vmatprep.subr.bf16.mxu0 %v319
    %447 = vmatpush1.bf16.msra.mxu0 %v318
    %448 = vmatprep.subr.bf16.mxu0 %v323
    %449 = vmatpush1.bf16.msra.mxu0 %v322
    %450 = vmatprep.subr.bf16.mxu0 %v327
    %451 = vmatpush1.bf16.msra.mxu0 %v326
    %452 = vmatprep.subr.bf16.mxu0 %v331
    %453 = vmatpush1.bf16.msra.mxu0 %v330
    %454 = vmatprep.subr.bf16.mxu0 %v335
    %455 = vmatpush1.bf16.msra.mxu0 %v334
    %456 = vmatprep.subr.bf16.mxu0 %v339
    %457 = vmatpush1.bf16.msra.mxu0 %v338
    %458 = vmatprep.subr.bf16.mxu0 %v343
    %459 = vmatpush1.bf16.msra.mxu0 %v342
    %460 = vmatprep.subr.bf16.mxu0 %v347
    %461 = vmatpush1.bf16.msra.mxu0 %v346
    %462 = vmatprep.subr.bf16.mxu0 %v351
    %463 = vmatpush1.bf16.msra.mxu0 %v350
    %464 = vmatprep.subr.bf16.mxu0 %v355
    %465 = vmatpush1.bf16.msra.mxu0 %v354
    %466 = vmatprep.subr.bf16.mxu0 %v359
    %467 = vmatpush1.bf16.msra.mxu0 %v358
    %468 = vmatprep.subr.bf16.mxu0 %v363
    %469 = vmatpush1.bf16.msra.mxu0 %v362
    %470 = vmatprep.subr.bf16.mxu0 %v367
    %471 = vmatpush1.bf16.msra.mxu0 %v366
    %472 = vmatprep.subr.bf16.mxu0 %v371
    %473 = vmatpush1.bf16.msra.mxu0 %v370
    %474 = vmatprep.subr.bf16.mxu0 %v375
    %475 = vmatpush1.bf16.msra.mxu0 %v374
    %476 = vmatprep.subr.bf16.mxu0 %v379
    %477 = vmatpush1.bf16.msra.mxu0 %v378
    %478 = vmatprep.mubr.bf16.mxu0 %v123
    %479 = vmatmul.mubr.bf16.gmra.mrb[0].mxu0 %v122
    %v480 = vpop.f32.mrb[0].mxu0
    %v481 = vadd.f32 0.0, %v480
    %v482 = vpop.f32.mrb[0].mxu0
    %v483 = vadd.f32 0.0, %v482
    %v484 = vpop.f32.mrb[0].mxu0
    %v485 = vadd.f32 0.0, %v484
    %v486 = vpop.f32.mrb[0].mxu0
    %v487 = vadd.f32 0.0, %v486
    %488 = vdwg.mxu0
    %489 = vmatprep.subr.bf16.mxu0 %v321
    %490 = vmatpush1.bf16.msra.mxu0 %v320
    %491 = vmatprep.subr.bf16.mxu0 %v325
    %492 = vmatpush1.bf16.msra.mxu0 %v324
    %493 = vmatprep.subr.bf16.mxu0 %v329
    %494 = vmatpush1.bf16.msra.mxu0 %v328
    %495 = vmatprep.subr.bf16.mxu0 %v333
    %496 = vmatpush1.bf16.msra.mxu0 %v332
    %497 = vmatprep.subr.bf16.mxu0 %v337
    %498 = vmatpush1.bf16.msra.mxu0 %v336
    %499 = vmatprep.subr.bf16.mxu0 %v341
    %500 = vmatpush1.bf16.msra.mxu0 %v340
    %501 = vmatprep.subr.bf16.mxu0 %v345
    %502 = vmatpush1.bf16.msra.mxu0 %v344
    %503 = vmatprep.subr.bf16.mxu0 %v349
    %504 = vmatpush1.bf16.msra.mxu0 %v348
    %505 = vmatprep.subr.bf16.mxu0 %v353
    %506 = vmatpush1.bf16.msra.mxu0 %v352
    %507 = vmatprep.subr.bf16.mxu0 %v357
    %508 = vmatpush1.bf16.msra.mxu0 %v356
    %509 = vmatprep.subr.bf16.mxu0 %v361
    %510 = vmatpush1.bf16.msra.mxu0 %v360
    %511 = vmatprep.subr.bf16.mxu0 %v365
    %512 = vmatpush1.bf16.msra.mxu0 %v364
    %513 = vmatprep.subr.bf16.mxu0 %v369
    %514 = vmatpush1.bf16.msra.mxu0 %v368
    %515 = vmatprep.subr.bf16.mxu0 %v373
    %516 = vmatpush1.bf16.msra.mxu0 %v372
    %517 = vmatprep.subr.bf16.mxu0 %v377
    %518 = vmatpush1.bf16.msra.mxu0 %v376
    %519 = vmatprep.subr.bf16.mxu0 %v381
    %520 = vmatpush1.bf16.msra.mxu0 %v380
    %521 = vmatprep.mubr.bf16.mxu0 %v123
    %522 = vmatmul.mubr.bf16.gmra.mrb[0].mxu0 %v122
    %v523 = vpop.f32.mrb[0].mxu0
    %v524 = vadd.f32 0.0, %v523
    %v525 = vpop.f32.mrb[0].mxu0
    %v526 = vadd.f32 0.0, %v525
    %v527 = vpop.f32.mrb[0].mxu0
    %v528 = vadd.f32 0.0, %v527
    %v529 = vpop.f32.mrb[0].mxu0
    %v530 = vadd.f32 0.0, %v529
    %531 = vdwg.mxu0
    %v532 = vld [vmem:[%s2] ss:$2 sm:$0xf]
    %v534 = vlaneseq
    %v535 = vshrl.u32 %v534, 7
    %v536 = vsub.s32 0, %v535
    %v537 = vrot.slane %v532, %v536
    %v538 = vlaneseq
    %v539 = vshrl.u32 %v538, 7
    %v540 = vsub.s32 1, %v539
    %v541 = vrot.slane %v532, %v540
    %v542 = vlaneseq
    %v543 = vshrl.u32 %v542, 7
    %v544 = vsub.s32 2, %v543
    %v545 = vrot.slane %v532, %v544
    %v546 = vlaneseq
    %v547 = vshrl.u32 %v546, 7
    %v548 = vsub.s32 3, %v547
    %v549 = vrot.slane %v532, %v548
    %v554 = vmul.f32 %v481, %v537
    %v555 = vmul.f32 %v483, %v541
    %v556 = vmul.f32 %v524, %v545
    %v557 = vmul.f32 %v526, %v549
    %v558 = vmul.f32 %v485, %v537
    %v559 = vmul.f32 %v487, %v541
    %v560 = vmul.f32 %v528, %v545
    %v561 = vmul.f32 %v530, %v549
    %s562 = scalar_lea.vmem %s2, 1
    %v563 = vld [vmem:[%s562] ss:$2 sm:$0xf]
    %v565 = vlaneseq
    %v566 = vshrl.u32 %v565, 7
    %v567 = vsub.s32 0, %v566
    %v568 = vrot.slane %v563, %v567
    %v569 = vlaneseq
    %v570 = vshrl.u32 %v569, 7
    %v571 = vsub.s32 1, %v570
    %v572 = vrot.slane %v563, %v571
    %v573 = vlaneseq
    %v574 = vshrl.u32 %v573, 7
    %v575 = vsub.s32 2, %v574
    %v576 = vrot.slane %v563, %v575
    %v577 = vlaneseq
    %v578 = vshrl.u32 %v577, 7
    %v579 = vsub.s32 3, %v578
    %v580 = vrot.slane %v563, %v579
    %v585 = vadd.f32 %v554, %v568
    %v586 = vadd.f32 %v555, %v572
    %v587 = vadd.f32 %v556, %v576
    %v588 = vadd.f32 %v557, %v580
    %v589 = vadd.f32 %v558, %v568
    %v590 = vadd.f32 %v559, %v572
    %v591 = vadd.f32 %v560, %v576
    %v592 = vadd.f32 %v561, %v580
    %v593 = vmax.f32 %v585, 0.0
    %v594 = vmax.f32 %v586, 0.0
    %v595 = vmax.f32 %v587, 0.0
    %v596 = vmax.f32 %v588, 0.0
    %v597 = vmax.f32 %v589, 0.0
    %v598 = vmax.f32 %v590, 0.0
    %v599 = vmax.f32 %v591, 0.0
    %v600 = vmax.f32 %v592, 0.0
    %v601 = vpack.c.bf16 %v597, %v593
    %v602 = vpack.c.bf16 %v598, %v594
    %v603 = vpack.c.bf16 %v599, %v595
    %v604 = vpack.c.bf16 %v600, %v596
    %v605 = vld [vmem:[#allocation5] sm:$0xf]
    %v606 = vld [vmem:[#allocation5 + $0x4] sm:$0xf]
    %v607 = vld [vmem:[#allocation5 + $0x8] sm:$0xf]
    %v608 = vld [vmem:[#allocation5 + $0xc] sm:$0xf]
    %v609 = vld [vmem:[#allocation5 + $0x10] sm:$0xf]
    %v610 = vld [vmem:[#allocation5 + $0x14] sm:$0xf]
    %v611 = vld [vmem:[#allocation5 + $0x18] sm:$0xf]
    %v612 = vld [vmem:[#allocation5 + $0x1c] sm:$0xf]
    %v613 = vld [vmem:[#allocation5 + $0x20] sm:$0xf]
    %v614 = vld [vmem:[#allocation5 + $0x24] sm:$0xf]
    %v615 = vld [vmem:[#allocation5 + $0x28] sm:$0xf]
    %v616 = vld [vmem:[#allocation5 + $0x2c] sm:$0xf]
    %v617 = vld [vmem:[#allocation5 + $0x30] sm:$0xf]
    %v618 = vld [vmem:[#allocation5 + $0x34] sm:$0xf]
    %v619 = vld [vmem:[#allocation5 + $0x38] sm:$0xf]
    %v620 = vld [vmem:[#allocation5 + $0x3c] sm:$0xf]
    %v621 = vld [vmem:[#allocation5 + $0x40] sm:$0xf]
    %v622 = vld [vmem:[#allocation5 + $0x44] sm:$0xf]
    %v623 = vld [vmem:[#allocation5 + $0x48] sm:$0xf]
    %v624 = vld [vmem:[#allocation5 + $0x4c] sm:$0xf]
    %v625 = vld [vmem:[#allocation5 + $0x50] sm:$0xf]
    %v626 = vld [vmem:[#allocation5 + $0x54] sm:$0xf]
    %v627 = vld [vmem:[#allocation5 + $0x58] sm:$0xf]
    %v628 = vld [vmem:[#allocation5 + $0x5c] sm:$0xf]
    %v629 = vld [vmem:[#allocation5 + $0x60] sm:$0xf]
    %v630 = vld [vmem:[#allocation5 + $0x64] sm:$0xf]
    %v631 = vld [vmem:[#allocation5 + $0x68] sm:$0xf]
    %v632 = vld [vmem:[#allocation5 + $0x6c] sm:$0xf]
    %v633 = vld [vmem:[#allocation5 + $0x70] sm:$0xf]
    %v634 = vld [vmem:[#allocation5 + $0x74] sm:$0xf]
    %v635 = vld [vmem:[#allocation5 + $0x78] sm:$0xf]
    %v636 = vld [vmem:[#allocation5 + $0x7c] sm:$0xf]
    %v637 = vld [vmem:[#allocation5 + $0x80] sm:$0xf]
    %v638 = vld [vmem:[#allocation5 + $0x84] sm:$0xf]
    %v639 = vld [vmem:[#allocation5 + $0x88] sm:$0xf]
    %v640 = vld [vmem:[#allocation5 + $0x8c] sm:$0xf]
    %v641 = vld [vmem:[#allocation5 + $0x90] sm:$0xf]
    %v642 = vld [vmem:[#allocation5 + $0x94] sm:$0xf]
    %v643 = vld [vmem:[#allocation5 + $0x98] sm:$0xf]
    %v644 = vld [vmem:[#allocation5 + $0x9c] sm:$0xf]
    %v645 = vld [vmem:[#allocation5 + $0xa0] sm:$0xf]
    %v646 = vld [vmem:[#allocation5 + $0xa4] sm:$0xf]
    %v647 = vld [vmem:[#allocation5 + $0xa8] sm:$0xf]
    %v648 = vld [vmem:[#allocation5 + $0xac] sm:$0xf]
    %v649 = vld [vmem:[#allocation5 + $0xb0] sm:$0xf]
    %v650 = vld [vmem:[#allocation5 + $0xb4] sm:$0xf]
    %v651 = vld [vmem:[#allocation5 + $0xb8] sm:$0xf]
    %v652 = vld [vmem:[#allocation5 + $0xbc] sm:$0xf]
    %v653 = vld [vmem:[#allocation5 + $0xc0] sm:$0xf]
    %v654 = vld [vmem:[#allocation5 + $0xc4] sm:$0xf]
    %v655 = vld [vmem:[#allocation5 + $0xc8] sm:$0xf]
    %v656 = vld [vmem:[#allocation5 + $0xcc] sm:$0xf]
    %v657 = vld [vmem:[#allocation5 + $0xd0] sm:$0xf]
    %v658 = vld [vmem:[#allocation5 + $0xd4] sm:$0xf]
    %v659 = vld [vmem:[#allocation5 + $0xd8] sm:$0xf]
    %v660 = vld [vmem:[#allocation5 + $0xdc] sm:$0xf]
    %v661 = vld [vmem:[#allocation5 + $0xe0] sm:$0xf]
    %v662 = vld [vmem:[#allocation5 + $0xe4] sm:$0xf]
    %v663 = vld [vmem:[#allocation5 + $0xe8] sm:$0xf]
    %v664 = vld [vmem:[#allocation5 + $0xec] sm:$0xf]
    %v665 = vld [vmem:[#allocation5 + $0xf0] sm:$0xf]
    %v666 = vld [vmem:[#allocation5 + $0xf4] sm:$0xf]
    %v667 = vld [vmem:[#allocation5 + $0xf8] sm:$0xf]
    %v668 = vld [vmem:[#allocation5 + $0xfc] sm:$0xf]
    %v669 = vld [vmem:[%s4] sm:$0x1]
    %v671 = vlaneseq
    %v672 = vshrl.u32 %v671, 7
    %v673 = vsub.s32 0, %v672
    %v674 = vrot.slane %v669, %v673
    %v740 = vunpack.c.l.b16 %v605
    %v741 = vunpack.c.l.b16 %v606
    %v742 = vunpack.c.l.b16 %v607
    %v743 = vunpack.c.l.b16 %v608
    %v744 = vunpack.c.l.b16 %v609
    %v745 = vunpack.c.l.b16 %v610
    %v746 = vunpack.c.l.b16 %v611
    %v747 = vunpack.c.l.b16 %v612
    %v748 = vunpack.c.l.b16 %v613
    %v749 = vunpack.c.l.b16 %v614
    %v750 = vunpack.c.l.b16 %v615
    %v751 = vunpack.c.l.b16 %v616
    %v752 = vunpack.c.l.b16 %v617
    %v753 = vunpack.c.l.b16 %v618
    %v754 = vunpack.c.l.b16 %v619
    %v755 = vunpack.c.l.b16 %v620
    %v756 = vunpack.c.l.b16 %v621
    %v757 = vunpack.c.l.b16 %v622
    %v758 = vunpack.c.l.b16 %v623
    %v759 = vunpack.c.l.b16 %v624
    %v760 = vunpack.c.l.b16 %v625
    %v761 = vunpack.c.l.b16 %v626
    %v762 = vunpack.c.l.b16 %v627
    %v763 = vunpack.c.l.b16 %v628
    %v764 = vunpack.c.l.b16 %v629
    %v765 = vunpack.c.l.b16 %v630
    %v766 = vunpack.c.l.b16 %v631
    %v767 = vunpack.c.l.b16 %v632
    %v768 = vunpack.c.l.b16 %v633
    %v769 = vunpack.c.l.b16 %v634
    %v770 = vunpack.c.l.b16 %v635
    %v771 = vunpack.c.l.b16 %v636
    %v772 = vunpack.c.l.b16 %v637
    %v773 = vunpack.c.l.b16 %v638
    %v774 = vunpack.c.l.b16 %v639
    %v775 = vunpack.c.l.b16 %v640
    %v776 = vunpack.c.l.b16 %v641
    %v777 = vunpack.c.l.b16 %v642
    %v778 = vunpack.c.l.b16 %v643
    %v779 = vunpack.c.l.b16 %v644
    %v780 = vunpack.c.l.b16 %v645
    %v781 = vunpack.c.l.b16 %v646
    %v782 = vunpack.c.l.b16 %v647
    %v783 = vunpack.c.l.b16 %v648
    %v784 = vunpack.c.l.b16 %v649
    %v785 = vunpack.c.l.b16 %v650
    %v786 = vunpack.c.l.b16 %v651
    %v787 = vunpack.c.l.b16 %v652
    %v788 = vunpack.c.l.b16 %v653
    %v789 = vunpack.c.l.b16 %v654
    %v790 = vunpack.c.l.b16 %v655
    %v791 = vunpack.c.l.b16 %v656
    %v792 = vunpack.c.l.b16 %v657
    %v793 = vunpack.c.l.b16 %v658
    %v794 = vunpack.c.l.b16 %v659
    %v795 = vunpack.c.l.b16 %v660
    %v796 = vunpack.c.l.b16 %v661
    %v797 = vunpack.c.l.b16 %v662
    %v798 = vunpack.c.l.b16 %v663
    %v799 = vunpack.c.l.b16 %v664
    %v800 = vunpack.c.l.b16 %v665
    %v801 = vunpack.c.l.b16 %v666
    %v802 = vunpack.c.l.b16 %v667
    %v803 = vunpack.c.l.b16 %v668
    %v804 = vpack.c.b16 %v741, %v740
    %v805 = vpack.c.b16 %v743, %v742
    %v806 = vpack.c.b16 %v745, %v744
    %v807 = vpack.c.b16 %v747, %v746
    %v808 = vpack.c.b16 %v749, %v748
    %v809 = vpack.c.b16 %v751, %v750
    %v810 = vpack.c.b16 %v753, %v752
    %v811 = vpack.c.b16 %v755, %v754
    %v812 = vpack.c.b16 %v757, %v756
    %v813 = vpack.c.b16 %v759, %v758
    %v814 = vpack.c.b16 %v761, %v760
    %v815 = vpack.c.b16 %v763, %v762
    %v816 = vpack.c.b16 %v765, %v764
    %v817 = vpack.c.b16 %v767, %v766
    %v818 = vpack.c.b16 %v769, %v768
    %v819 = vpack.c.b16 %v771, %v770
    %v820 = vpack.c.b16 %v773, %v772
    %v821 = vpack.c.b16 %v775, %v774
    %v822 = vpack.c.b16 %v777, %v776
    %v823 = vpack.c.b16 %v779, %v778
    %v824 = vpack.c.b16 %v781, %v780
    %v825 = vpack.c.b16 %v783, %v782
    %v826 = vpack.c.b16 %v785, %v784
    %v827 = vpack.c.b16 %v787, %v786
    %v828 = vpack.c.b16 %v789, %v788
    %v829 = vpack.c.b16 %v791, %v790
    %v830 = vpack.c.b16 %v793, %v792
    %v831 = vpack.c.b16 %v795, %v794
    %v832 = vpack.c.b16 %v797, %v796
    %v833 = vpack.c.b16 %v799, %v798
    %v834 = vpack.c.b16 %v801, %v800
    %v835 = vpack.c.b16 %v803, %v802
    %868 = vmatprep.subr.bf16.mxu0 0
    %869 = vmatpush1.bf16.msra.mxu0 %v804
    %870 = vmatprep.subr.bf16.mxu0 0
    %871 = vmatpush1.bf16.msra.mxu0 %v805
    %872 = vmatprep.subr.bf16.mxu0 0
    %873 = vmatpush1.bf16.msra.mxu0 %v806
    %874 = vmatprep.subr.bf16.mxu0 0
    %875 = vmatpush1.bf16.msra.mxu0 %v807
    %876 = vmatprep.subr.bf16.mxu0 0
    %877 = vmatpush1.bf16.msra.mxu0 %v808
    %878 = vmatprep.subr.bf16.mxu0 0
    %879 = vmatpush1.bf16.msra.mxu0 %v809
    %880 = vmatprep.subr.bf16.mxu0 0
    %881 = vmatpush1.bf16.msra.mxu0 %v810
    %882 = vmatprep.subr.bf16.mxu0 0
    %883 = vmatpush1.bf16.msra.mxu0 %v811
    %884 = vmatprep.subr.bf16.mxu0 0
    %885 = vmatpush1.bf16.msra.mxu0 %v812
    %886 = vmatprep.subr.bf16.mxu0 0
    %887 = vmatpush1.bf16.msra.mxu0 %v813
    %888 = vmatprep.subr.bf16.mxu0 0
    %889 = vmatpush1.bf16.msra.mxu0 %v814
    %890 = vmatprep.subr.bf16.mxu0 0
    %891 = vmatpush1.bf16.msra.mxu0 %v815
    %892 = vmatprep.subr.bf16.mxu0 0
    %893 = vmatpush1.bf16.msra.mxu0 %v816
    %894 = vmatprep.subr.bf16.mxu0 0
    %895 = vmatpush1.bf16.msra.mxu0 %v817
    %896 = vmatprep.subr.bf16.mxu0 0
    %897 = vmatpush1.bf16.msra.mxu0 %v818
    %898 = vmatprep.subr.bf16.mxu0 0
    %899 = vmatpush1.bf16.msra.mxu0 %v819
    %900 = vmatprep.mubr.bf16.mxu0 %v602
    %901 = vmatmul.mubr.bf16.gmra.mrb[0].mxu0 %v601
    %v902 = vpop.f32.mrb[0].mxu0
    %v903 = vadd.f32 %v674, %v902
    %v904 = vpop.f32.mrb[0].mxu0
    %v905 = vpop.f32.mrb[0].mxu0
    %v906 = vadd.f32 %v674, %v905
    %v907 = vpop.f32.mrb[0].mxu0
    %908 = vdwg.mxu0
    %909 = vmatprep.subr.bf16.mxu0 0
    %910 = vmatpush1.bf16.msra.mxu0 %v820
    %911 = vmatprep.subr.bf16.mxu0 0
    %912 = vmatpush1.bf16.msra.mxu0 %v821
    %913 = vmatprep.subr.bf16.mxu0 0
    %914 = vmatpush1.bf16.msra.mxu0 %v822
    %915 = vmatprep.subr.bf16.mxu0 0
    %916 = vmatpush1.bf16.msra.mxu0 %v823
    %917 = vmatprep.subr.bf16.mxu0 0
    %918 = vmatpush1.bf16.msra.mxu0 %v824
    %919 = vmatprep.subr.bf16.mxu0 0
    %920 = vmatpush1.bf16.msra.mxu0 %v825
    %921 = vmatprep.subr.bf16.mxu0 0
    %922 = vmatpush1.bf16.msra.mxu0 %v826
    %923 = vmatprep.subr.bf16.mxu0 0
    %924 = vmatpush1.bf16.msra.mxu0 %v827
    %925 = vmatprep.subr.bf16.mxu0 0
    %926 = vmatpush1.bf16.msra.mxu0 %v828
    %927 = vmatprep.subr.bf16.mxu0 0
    %928 = vmatpush1.bf16.msra.mxu0 %v829
    %929 = vmatprep.subr.bf16.mxu0 0
    %930 = vmatpush1.bf16.msra.mxu0 %v830
    %931 = vmatprep.subr.bf16.mxu0 0
    %932 = vmatpush1.bf16.msra.mxu0 %v831
    %933 = vmatprep.subr.bf16.mxu0 0
    %934 = vmatpush1.bf16.msra.mxu0 %v832
    %935 = vmatprep.subr.bf16.mxu0 0
    %936 = vmatpush1.bf16.msra.mxu0 %v833
    %937 = vmatprep.subr.bf16.mxu0 0
    %938 = vmatpush1.bf16.msra.mxu0 %v834
    %939 = vmatprep.subr.bf16.mxu0 0
    %940 = vmatpush1.bf16.msra.mxu0 %v835
    %941 = vmatprep.mubr.bf16.mxu0 %v604
    %942 = vmatmul.mubr.bf16.gmra.mrb[0].mxu0 %v603
    %v943 = vpop.f32.mrb[0].mxu0
    %v944 = vadd.f32 %v903, %v943
    %v945 = vpop.f32.mrb[0].mxu0
    %v946 = vpop.f32.mrb[0].mxu0
    %v947 = vadd.f32 %v906, %v946
    %v948 = vpop.f32.mrb[0].mxu0
    %949 = vdwg.mxu0
    %950 = vst [vmem:[#allocation7] sm:$0xff] %v944
    %951 = vst [vmem:[#allocation7 + $0x8] sm:$0xff] %v947
    // Predicated region
    $region30: #{mlp_pallas.1} parent=1 // pred_check
      _
    $region31: #{mlp_pallas.1} parent=1 // pred_check_branch
      %953 = sbr.rel (0) target = $region33
    $region32: #{mlp_pallas.1} parent=1 // pred_region
      %s955 = ssub.s32 256, 256
      %956 = vsyncadd [#allocation4], %s955
      %s957 = sshll.u32 [#allocation7], 4
      %s958 = int_to_ptr.vmem [resolvable:$true] %s957
      %963 = dma.vmem_to_hbm [thread:$0]  %s958, 256, %s5, [#allocation4], 128, 128, 8
    $region33: #{mlp_pallas.1} parent=1 // pred_fallthru
      _
    // Predicated region
    $region34: #{mlp_pallas.1} parent=1 // pred_check
      _
    $region35: #{mlp_pallas.1} parent=1 // pred_check_branch
      %965 = sbr.rel (0) target = $region37
    $region36: #{mlp_pallas.1} parent=1 // pred_region
      %966 = dma.done [#allocation4], 256
    $region37: #{mlp_pallas.1} parent=1 // pred_fallthru
      _
    %967 = vsyncpa [#allocation3], 1
    %968 = vsyncpa [#allocation6], 1
    %969 = vsyncpa [#allocation4], 1

</llo_original>
